<compile_context>
chip_gen: v7x
topology: tpu7x:2x2x1
jax: 0.10.0
libtpu: 0.0.40
codegen_flags: <defaults>
</compile_context>

<pallas_src>
import jax
import jax.numpy as jnp
import numpy as np
from jax import lax
from jax.experimental import pallas as pl
from jax.experimental.pallas import tpu as pltpu


def _cnn2d_kernel(p_ref, w_ref, b_ref, o_ref):
    # p_ref: (9*Cin, L)      3x3/stride-2 patch matrix, lane = n*HP*WP + i*WP + j
    # w_ref: (4*Cout, 9*Cin) conv weights embedded at the 4 pool-tap offsets
    # b_ref: (4*Cout, 1)     bias, tiled once per pool tap
    # o_ref: (Cout, L)       pooled output (lane-dense)
    acc = jnp.dot(w_ref[...], p_ref[...], preferred_element_type=jnp.float32)
    y = jnp.maximum(acc + b_ref[...], 0.0)                 # bias + ReLU, full-lane vregs
    c = o_ref.shape[0]                                     # Cout
    p01 = jnp.maximum(y[0 * c:1 * c, :], y[1 * c:2 * c, :])
    p23 = jnp.maximum(y[2 * c:3 * c, :], y[3 * c:4 * c, :])
    o_ref[...] = jnp.maximum(p01, p23).astype(o_ref.dtype)  # 2x2 max-pool over taps


def cnn2d_unit_forward(x_nchw, weight, bias, *, kernel_size=2, stride=1, padding=1):
    """Conv2d(k=2, s=1, p=1) + ReLU + MaxPool2d(2) — matches Cnn2dUnit.forward."""
    assert kernel_size == 2 and stride == 1
    N, Cin, H, W = x_nchw.shape
    Cout = weight.shape[0]
    K = kernel_size
    Ho = (H + 2 * padding - K) // stride + 1      # conv output height (17 for H=16)
    Wo = (W + 2 * padding - K) // stride + 1
    HP, WP = Ho // 2, Wo // 2                     # MaxPool2d(2): stride 2, floor mode
    L = N * HP * WP                               # pooled pixels folded over batch (=128)
    K3 = K + 1                                    # 3x3 combined conv+pool input window

    # --- JAX glue: pad + 3x3/stride-2 im2col (layout plumbing only) ---
    xf = x_nchw.astype(jnp.float32)
    xp = jnp.pad(xf, ((0, 0), (0, 0), (padding, padding), (padding, padding)))
    taps = [xp[:, :, a:a + 2 * HP:2, b:b + 2 * WP:2]      # (N, Cin, HP, WP) each
            for a in range(K3) for b in range(K3)]
    pat = jnp.stack(taps, axis=0)                          # (9, N, Cin, HP, WP), axis0 = (a,b)
    pat = jnp.transpose(pat, (0, 2, 1, 3, 4))              # (9, Cin, N, HP, WP)
    patches = pat.reshape(K3 * K3 * Cin, L)                # rows = (a, b, c); lanes = (n, i, j)

    # --- expanded weights: 2x2 kernel placed at the 4 pool-tap offsets in 3x3 ---
    w_oxyc = jnp.transpose(weight.astype(jnp.float32), (0, 2, 3, 1))   # (Cout, kh, kw, Cin)
    w_rows = []
    for di in range(2):
        for dj in range(2):
            wp = jnp.pad(w_oxyc, ((0, 0), (di, 1 - di), (dj, 1 - dj), (0, 0)))  # (Cout,3,3,Cin)
            w_rows.append(wp.reshape(Cout, K3 * K3 * Cin))
    w_exp = jnp.concatenate(w_rows, axis=0)                # (4*Cout, 9*Cin), rows = (tap, o)
    b_exp = jnp.tile(bias.astype(jnp.float32), 4).reshape(4 * Cout, 1)

    # --- Pallas kernel: single grid-less invocation, everything resident in VMEM ---
    out_flat = pl.pallas_call(
        _cnn2d_kernel,
        out_shape=jax.ShapeDtypeStruct((Cout, L), jnp.float32),
    )(patches, w_exp, b_exp)

    out = out_flat.reshape(Cout, N, HP, WP)
    return jnp.transpose(out, (1, 0, 2, 3))                # NCHW


def _reference(x, w, b):
    """Pure-JAX reference of the same forward pass (for correctness check)."""
    y = lax.conv_general_dilated(
        x, w, window_strides=(1, 1), padding=((1, 1), (1, 1)),
        dimension_numbers=("NCHW", "OIHW", "NCHW"))
    y = y + b[None, :, None, None]
    y = jnp.maximum(y, 0.0)
    y = lax.reduce_window(y, -jnp.inf, lax.max, (1, 1, 2, 2), (1, 1, 2, 2), "VALID")
    return y


if __name__ == "__main__":
    key = jax.random.PRNGKey(0)
    k1, k2, k3 = jax.random.split(key, 3)

    N, Cin, H, W, Cout = 2, 4, 16, 16, 8
    x = jax.random.normal(k1, (N, Cin, H, W), dtype=jnp.float32)
    # Deterministic synthetic parameters (LazyConv2d infers Cin=4 on first call).
    weight = jax.random.normal(k2, (Cout, Cin, 2, 2), dtype=jnp.float32) * 0.1
    bias = jax.random.normal(k3, (Cout,), dtype=jnp.float32) * 0.1

    out = jax.block_until_ready(cnn2d_unit_forward(x, weight, bias))
    assert out.shape == (N, Cout, 8, 8), out.shape

    ref = jax.block_until_ready(_reference(x, weight, bias))
    np.testing.assert_allclose(np.asarray(out), np.asarray(ref), rtol=1e-5, atol=1e-5)

    print("KERNEL_OK")
</pallas_src>

<mosaic_0001>
module attributes {stable_mosaic.version = 11 : i64} {
  func.func @_cnn2d_kernel(%arg0: memref<36x128xf32, #tpu.memory_space<vmem>>, %arg1: memref<32x36xf32, #tpu.memory_space<vmem>>, %arg2: memref<32x1xf32, #tpu.memory_space<vmem>>, %arg3: memref<8x128xf32, #tpu.memory_space<vmem>>) attributes {dimension_semantics = [], scalar_prefetch = 0 : i64, scratch_operands = 0 : i64, tpu.core_type = #tpu.core_type<tc>} {
    %c0 = arith.constant 0 : index
    %c0_0 = arith.constant 0 : index
    %0 = vector.load %arg1[%c0, %c0_0] : memref<32x36xf32, #tpu.memory_space<vmem>>, vector<32x36xf32>
    %c0_1 = arith.constant 0 : index
    %c0_2 = arith.constant 0 : index
    %1 = vector.load %arg0[%c0_1, %c0_2] : memref<36x128xf32, #tpu.memory_space<vmem>>, vector<36x128xf32>
    %cst = arith.constant dense<0.000000e+00> : vector<32x128xf32>
    %2 = tpu.matmul %0, %1, %cst {dimension_numbers = #tpu.dot_dimension_numbers<[1], [0], [0], [1], [0, 0, 1, 1], [], []>} : vector<32x36xf32>, vector<36x128xf32>, vector<32x128xf32> -> vector<32x128xf32>
    %c0_3 = arith.constant 0 : index
    %c0_4 = arith.constant 0 : index
    %3 = vector.load %arg2[%c0_3, %c0_4] : memref<32x1xf32, #tpu.memory_space<vmem>>, vector<32x1xf32>
    %4 = vector.broadcast %3 : vector<32x1xf32> to vector<32x128xf32>
    %5 = arith.addf %2, %4 : vector<32x128xf32>
    %cst_5 = arith.constant 0.000000e+00 : f32
    %6 = vector.broadcast %cst_5 : f32 to vector<32x128xf32>
    %7 = arith.maximumf %5, %6 : vector<32x128xf32>
    %8 = vector.extract_strided_slice %7 {offsets = [0, 0], sizes = [8, 128], strides = [1, 1]} : vector<32x128xf32> to vector<8x128xf32>
    %9 = vector.extract_strided_slice %7 {offsets = [8, 0], sizes = [8, 128], strides = [1, 1]} : vector<32x128xf32> to vector<8x128xf32>
    %10 = arith.maximumf %8, %9 : vector<8x128xf32>
    %11 = vector.extract_strided_slice %7 {offsets = [16, 0], sizes = [8, 128], strides = [1, 1]} : vector<32x128xf32> to vector<8x128xf32>
    %12 = vector.extract_strided_slice %7 {offsets = [24, 0], sizes = [8, 128], strides = [1, 1]} : vector<32x128xf32> to vector<8x128xf32>
    %13 = arith.maximumf %11, %12 : vector<8x128xf32>
    %14 = arith.maximumf %10, %13 : vector<8x128xf32>
    %c0_6 = arith.constant 0 : index
    %c0_7 = arith.constant 0 : index
    %15 = vector.load %arg3[%c0_6, %c0_7] : memref<8x128xf32, #tpu.memory_space<vmem>>, vector<8x128xf32>
    tpu.vector_store %arg3[%c0_6, %c0_7], %14 {strides = array<i32>} : memref<8x128xf32, #tpu.memory_space<vmem>>, vector<8x128xf32>,
    return
  }
}

</mosaic_0001>

<llo_original>
// kernel: tpu_custom_call.1
$region0: #{tpu_custom_call.1}
  #allocation0 [shape = 'u32[]', space=smem, size = 0x4, offset = 0x4, fixed_abs, tag = 'smem constant byte address 0x4 - core index']
  #allocation1 [shape = 'u32[144,128]{1,0:T(1,128)}', space=vmem, size = 0x12000, scoped, tag = 'internal scratch']
  %s0 = inlined_call_operand.hbm [shape: f32[36,128], index: 0, kind: input, shape index: {}]
  %s1 = inlined_call_operand.vmem [shape: f32[32,36], index: 1, kind: input, shape index: {}]
  %s2 = inlined_call_operand.vmem [shape: f32[32,1], index: 2, kind: input, shape index: {}]
  %s3 = inlined_call_operand.hbm [shape: f32[8,128], index: 3, kind: output, shape index: {}]
  %s4 = sld [smem:[#allocation0]]
  $region26: #{tpu_custom_call.1} parent=0
    _
  %s6 = ssub.s32 1, %s4
  %s7 = scalar_select 0, %s6, %s4
  $region1: #{tpu_custom_call.1} parent=0
    #allocation2 [shape = 'u8[20480]{0}', space=vmem, size = 0x5000, scoped, tag = 'input window, operand 0, single buffered']
    #allocation3 [shape = 's32[1]{0}', space=sflag, size = 0x4, scoped, tag = 'scoped memory for tpu_custom_call.1']
    #allocation4 [shape = 's32[1]{0}', space=sflag, size = 0x4, scoped, tag = 'scoped memory for tpu_custom_call.1']
    #allocation5 [shape = 'u8[4096]{0}', space=vmem, size = 0x1000, scoped, tag = 'output window, operand 0, single buffered']
    %8 = vsyncpa [#allocation3], 0
    %9 = vsyncpa [#allocation4], 0
    // Predicated region
    $region2: #{tpu_custom_call.1} parent=1 // pred_check
      _
    $region3: #{tpu_custom_call.1} parent=1 // pred_check_branch
      %11 = sbr.rel (0) target = $region5
    $region4: #{tpu_custom_call.1} parent=1 // pred_region
      %s13 = ssub.s32 640, 640
      %14 = vsyncadd [#allocation3], %s13
      %s15 = sshll.u32 [#allocation2], 4
      %s16 = int_to_ptr.vmem [resolvable:$true] %s15
      %21 = dma.hbm_to_vmem [thread:$0]  %s0, 640, %s16, [#allocation3], 128, 128, 8
    $region5: #{tpu_custom_call.1} parent=1 // pred_fallthru
      _
    // Predicated region
    $region6: #{tpu_custom_call.1} parent=1 // pred_check
      _
    $region7: #{tpu_custom_call.1} parent=1 // pred_check_branch
      %23 = sbr.rel (0) target = $region9
    $region8: #{tpu_custom_call.1} parent=1 // pred_region
      _
    $region9: #{tpu_custom_call.1} parent=1 // pred_fallthru
      _
    // Predicated region
    $region10: #{tpu_custom_call.1} parent=1 // pred_check
      _
    $region11: #{tpu_custom_call.1} parent=1 // pred_check_branch
      %25 = sbr.rel (0) target = $region13
    $region12: #{tpu_custom_call.1} parent=1 // pred_region
      _
    $region13: #{tpu_custom_call.1} parent=1 // pred_fallthru
      _
    // Predicated region
    $region14: #{tpu_custom_call.1} parent=1 // pred_check
      _
    $region15: #{tpu_custom_call.1} parent=1 // pred_check_branch
      %27 = sbr.rel (0) target = $region17
    $region16: #{tpu_custom_call.1} parent=1 // pred_region
      %28 = dma.done [#allocation3], 640
    $region17: #{tpu_custom_call.1} parent=1 // pred_fallthru
      _
    %v29 = vld [vmem:[%s1] sm:$0xff]
    %v30 = vld [vmem:[%s1 + $0x8] sm:$0xff]
    %v31 = vld [vmem:[%s1 + $0x10] sm:$0xff]
    %v32 = vld [vmem:[%s1 + $0x18] sm:$0xff]
    %v33 = vld [vmem:[#allocation2] sm:$0xff]
    %v34 = vld [vmem:[#allocation2 + $0x8] sm:$0xff]
    %v35 = vld [vmem:[#allocation2 + $0x10] sm:$0xff]
    %v36 = vld [vmem:[#allocation2 + $0x18] sm:$0xff]
    %v37 = vld [vmem:[#allocation2 + $0x20] sm:$0xf]
    %v38 = vld [vmem:[%s2] sm:$0xff]
    %v39 = vld [vmem:[%s2 + $0x8] sm:$0xff]
    %v40 = vld [vmem:[%s2 + $0x10] sm:$0xff]
    %v41 = vld [vmem:[%s2 + $0x18] sm:$0xff]
    %43 = vset.pattern.permute.xlu0 0
    %44 = vperm.xlu0 %43, %v38
    %v45 = vpop.permute.xlu0 %44
    %48 = vset.pattern.permute.xlu0 0
    %49 = vperm.xlu0 %48, %v39
    %v50 = vpop.permute.xlu0 %49
    %53 = vset.pattern.permute.xlu0 0
    %54 = vperm.xlu0 %53, %v40
    %v55 = vpop.permute.xlu0 %54
    %58 = vset.pattern.permute.xlu0 0
    %59 = vperm.xlu0 %58, %v41
    %v60 = vpop.permute.xlu0 %59
    %vm62 = vcmask 293888
    %v64 = vsel %vm62, %v29, 0
    %v67 = vsel %vm62, %v30, 0
    %v70 = vsel %vm62, %v31, 0
    %v73 = vsel %vm62, %v32, 0
    %vm75 = vcmask 1043456
    %v77 = vsel %vm75, %v37, 0
    %79 = vmatprep.subr.mxu0 0.0
    %80 = vmatpush1.msra.mxu0 %v33
    %81 = vmatprep.subr.mxu0 0.0
    %82 = vmatpush1.msra.mxu0 %v34
    %83 = vmatprep.subr.mxu0 0.0
    %84 = vmatpush1.msra.mxu0 %v35
    %85 = vmatprep.subr.mxu0 0.0
    %86 = vmatpush1.msra.mxu0 %v36
    %87 = vmatprep.subr.mxu0 0.0
    %88 = vmatpush1.msra.mxu0 %v77
    %89 = vmatprep.subr.mxu0 0.0
    %90 = vmatpush1.msra.mxu0 0.0
    %91 = vmatprep.subr.mxu0 0.0
    %92 = vmatpush1.msra.mxu0 0.0
    %93 = vmatprep.subr.mxu0 0.0
    %94 = vmatpush1.msra.mxu0 0.0
    %95 = vmatprep.subr.mxu0 0.0
    %96 = vmatpush1.msra.mxu0 0.0
    %97 = vmatprep.subr.mxu0 0.0
    %98 = vmatpush1.msra.mxu0 0.0
    %99 = vmatprep.subr.mxu0 0.0
    %100 = vmatpush1.msra.mxu0 0.0
    %101 = vmatprep.subr.mxu0 0.0
    %102 = vmatpush1.msra.mxu0 0.0
    %103 = vmatprep.subr.mxu0 0.0
    %104 = vmatpush1.msra.mxu0 0.0
    %105 = vmatprep.subr.mxu0 0.0
    %106 = vmatpush1.msra.mxu0 0.0
    %107 = vmatprep.subr.mxu0 0.0
    %108 = vmatpush1.msra.mxu0 0.0
    %109 = vmatprep.subr.mxu0 0.0
    %110 = vmatpush1.msra.mxu0 0.0
    %111 = vmatprep.subr.mxu0 0.0
    %112 = vmatpush1.msra.mxu0 0.0
    %113 = vmatprep.subr.mxu0 0.0
    %114 = vmatpush1.msra.mxu0 0.0
    %115 = vmatprep.subr.mxu0 0.0
    %116 = vmatpush1.msra.mxu0 0.0
    %117 = vmatprep.subr.mxu0 0.0
    %118 = vmatpush1.msra.mxu0 0.0
    %119 = vmatprep.subr.mxu0 0.0
    %120 = vmatpush1.msra.mxu0 0.0
    %121 = vmatprep.subr.mxu0 0.0
    %122 = vmatpush1.msra.mxu0 0.0
    %123 = vmatprep.subr.mxu0 0.0
    %124 = vmatpush1.msra.mxu0 0.0
    %125 = vmatprep.subr.mxu0 0.0
    %126 = vmatpush1.msra.mxu0 0.0
    %127 = vmatprep.subr.mxu0 0.0
    %128 = vmatpush1.msra.mxu0 0.0
    %129 = vmatprep.subr.mxu0 0.0
    %130 = vmatpush1.msra.mxu0 0.0
    %131 = vmatprep.subr.mxu0 0.0
    %132 = vmatpush1.msra.mxu0 0.0
    %133 = vmatprep.subr.mxu0 0.0
    %134 = vmatpush1.msra.mxu0 0.0
    %135 = vmatprep.subr.mxu0 0.0
    %136 = vmatpush1.msra.mxu0 0.0
    %137 = vmatprep.subr.mxu0 0.0
    %138 = vmatpush1.msra.mxu0 0.0
    %139 = vmatprep.subr.mxu0 0.0
    %140 = vmatpush1.msra.mxu0 0.0
    %141 = vmatprep.subr.mxu0 0.0
    %142 = vmatpush1.msra.mxu0 0.0
    %143 = vmatprep.mubr.f32.mxu0 0.0
    %144 = vmatmul.mubr.f32.gmra.mrb[0].mxu0 %v64
    %v145 = vpop.f32.mrb[0].mxu0
    %v146 = vadd.f32 %v45, %v145
    %v147 = vpop.f32.mrb[0].mxu0
    %148 = vmatprep.mubr.f32.mxu0 0.0
    %149 = vmatmul.mubr.f32.gmra.mrb[0].mxu0 %v67
    %v150 = vpop.f32.mrb[0].mxu0
    %v151 = vadd.f32 %v50, %v150
    %v152 = vpop.f32.mrb[0].mxu0
    %153 = vmatprep.mubr.f32.mxu0 0.0
    %154 = vmatmul.mubr.f32.gmra.mrb[0].mxu0 %v70
    %v155 = vpop.f32.mrb[0].mxu0
    %v156 = vadd.f32 %v55, %v155
    %v157 = vpop.f32.mrb[0].mxu0
    %158 = vmatprep.mubr.f32.mxu0 0.0
    %159 = vmatmul.mubr.f32.gmra.mrb[0].mxu0 %v73
    %v160 = vpop.f32.mrb[0].mxu0
    %v161 = vadd.f32 %v60, %v160
    %v162 = vpop.f32.mrb[0].mxu0
    %163 = vdwg.mxu0
    %v164 = vmax.f32 %v146, 0.0
    %v165 = vmax.f32 %v151, 0.0
    %v166 = vmax.f32 %v156, 0.0
    %v167 = vmax.f32 %v161, 0.0
    %v168 = vmax.f32 %v164, %v165
    %v169 = vmax.f32 %v166, %v167
    %v170 = vmax.f32 %v168, %v169
    %171 = vst [vmem:[#allocation5] sm:$0xff] %v170
    // Predicated region
    $region18: #{tpu_custom_call.1} parent=1 // pred_check
      _
    $region19: #{tpu_custom_call.1} parent=1 // pred_check_branch
      %173 = sbr.rel (0) target = $region21
    $region20: #{tpu_custom_call.1} parent=1 // pred_region
      %s175 = ssub.s32 128, 128
      %176 = vsyncadd [#allocation4], %s175
      %s178 = sshll.u32 [#allocation5], 4
      %s179 = int_to_ptr.vmem [resolvable:$true] %s178
      %181 = dma.vmem_to_hbm [thread:$0]  %s179, 128, %s3, [#allocation4]
    $region21: #{tpu_custom_call.1} parent=1 // pred_fallthru
      _
    // Predicated region
    $region22: #{tpu_custom_call.1} parent=1 // pred_check
      _
    $region23: #{tpu_custom_call.1} parent=1 // pred_check_branch
      %183 = sbr.rel (0) target = $region25
    $region24: #{tpu_custom_call.1} parent=1 // pred_region
      %184 = dma.done [#allocation4], 128
    $region25: #{tpu_custom_call.1} parent=1 // pred_fallthru
      _
    %185 = vsyncpa [#allocation3], 1
    %186 = vsyncpa [#allocation4], 1

</llo_original>
